<compile_context>
chip_gen: v6e
topology: v6e:2x2x1
jax: 0.10.0
libtpu: 0.0.40
codegen_flags: <defaults>
</compile_context>

<pallas_src>
import functools

import jax
import jax.numpy as jnp
from jax.experimental import pallas as pl
from jax.experimental.pallas import tpu as pltpu

_EPS = 1e-8
_LANE_CHOICES = (1024, 512, 256, 128)   # lane width candidates (multiples of 128)
_MAX_TILE_BYTES = 1 << 20               # <= 1 MiB f32 per input tile per grid step


def _round_up(x, m):
    return ((x + m - 1) // m) * m


def _largest_tile_rows(rows, lane):
    """Largest multiple-of-8 divisor of `rows` keeping tile <= _MAX_TILE_BYTES."""
    max_rows = max(8, _MAX_TILE_BYTES // (lane * 4))
    best = 8
    cand = 8
    limit = min(rows, max_rows)
    while cand <= limit:
        if rows % cand == 0:
            best = cand
        cand += 8
    return best


def _choose_layout(n):
    """Pick (lane, rows_pad, tile_rows) for a per-sample vector of length n."""
    # Prefer a padding-free layout: lane | n and (n // lane) % 8 == 0.
    for lane in _LANE_CHOICES:
        if n % lane == 0 and (n // lane) % 8 == 0:
            rows = n // lane
            return lane, rows, _largest_tile_rows(rows, lane)
    # Fallback: pad rows up to a multiple of 8 (pad values contribute zero).
    lane = min(_LANE_CHOICES[0], _round_up(n, 128))
    rows_pad = _round_up(-(-n // lane), 8)
    return lane, rows_pad, _largest_tile_rows(rows_pad, lane)


def _si_rmse_kernel(p_ref, t_ref, out_ref, sum_ref, sq_ref, *, inv_n):
    """Grid = (batch, row_tile).

    p/t refs: (tile_rows, lane); out ref: (1, 1);
    scratch sum/sq: (tile_rows, lane) full-tile accumulators.
    """
    k = pl.program_id(1)

    @pl.when(k == 0)
    def _init():
        sum_ref[...] = jnp.zeros_like(sum_ref)
        sq_ref[...] = jnp.zeros_like(sq_ref)

    p = p_ref[...].astype(jnp.float32)          # (tile_rows, lane)
    t = t_ref[...].astype(jnp.float32)
    # Exact spec form: log(target+eps) - log(pred+eps).  2 EUP pushes/elem.
    delta = jnp.log(t + _EPS) - jnp.log(p + _EPS)

    # Pure VPU accumulation in the hot loop; no cross-lane reductions here.
    sum_ref[...] += delta
    sq_ref[...] += delta * delta

    @pl.when(k == pl.num_programs(1) - 1)
    def _finalize():
        # Single lane (XLU) + sublane reduce, done once per sample.
        s_rows = jnp.sum(sum_ref[...], axis=1, keepdims=True)      # (tile_rows, 1)
        s = jnp.sum(s_rows, axis=0, keepdims=True)                  # (1, 1)
        q_rows = jnp.sum(sq_ref[...], axis=1, keepdims=True)
        q = jnp.sum(q_rows, axis=0, keepdims=True)
        mean_d = s * inv_n                                           # E[delta]
        var = q * inv_n - mean_d * mean_d                            # E[d^2]-E[d]^2
        out_ref[...] = jnp.sqrt(jnp.maximum(var, 0.0))               # guard cancellation


def scaleinvariant_rmse(pred, target):
    """pred, target: NCHW arrays (e.g. (B, 1, H, W)). Returns scalar f32 loss."""
    # torch-style .squeeze(): drops ALL size-1 dims ((B,1,H,W) -> (B,H,W)).
    # NOTE: mirrors PyTorch exactly; a B=1 input would also lose its batch dim.
    pred_s = jnp.squeeze(pred)
    target_s = jnp.squeeze(target)
    b = pred_s.shape[0]
    p = pred_s.reshape(b, -1)
    t = target_s.reshape(b, -1)
    n = p.shape[1]

    lane, rows_pad, tile_rows = _choose_layout(n)
    n_pad = rows_pad * lane
    if n_pad != n:
        # Identical pad values in both inputs -> delta == 0 on the pad region.
        p = jnp.pad(p, ((0, 0), (0, n_pad - n)), constant_values=1.0)
        t = jnp.pad(t, ((0, 0), (0, n_pad - n)), constant_values=1.0)
    p3 = p.reshape(b, rows_pad, lane)
    t3 = t.reshape(b, rows_pad, lane)
    k_steps = rows_pad // tile_rows

    kernel = functools.partial(_si_rmse_kernel, inv_n=1.0 / n)

    per_sample = pl.pallas_call(
        kernel,
        out_shape=jax.ShapeDtypeStruct((b, 1, 1), jnp.float32),
        grid=(b, k_steps),
        in_specs=[
            pl.BlockSpec((None, tile_rows, lane), lambda i, k: (i, k, 0)),
            pl.BlockSpec((None, tile_rows, lane), lambda i, k: (i, k, 0)),
        ],
        out_specs=pl.BlockSpec((None, 1, 1), lambda i, k: (i, 0, 0)),
        scratch_shapes=[
            pltpu.VMEM((tile_rows, lane), jnp.float32),   # running sum(delta)
            pltpu.VMEM((tile_rows, lane), jnp.float32),   # running sum(delta^2)
        ],
        compiler_params=pltpu.CompilerParams(
            dimension_semantics=("parallel", "arbitrary"),
            vmem_limit_bytes=32 * 1024 * 1024,
        ),
    )(p3, t3)

    # Tiny epilogue over B scalars (batch mean), done in plain JAX.
    return jnp.mean(per_sample[:, 0, 0])


if __name__ == "__main__":
    key = jax.random.PRNGKey(0)
    k1, k2 = jax.random.split(key)
    B, C, H, W = 2, 1, 16, 16
    # Positive, depth-like inputs; deterministic.
    pred = jax.random.uniform(k1, (B, C, H, W), jnp.float32, minval=0.1, maxval=10.0)
    target = jax.random.uniform(k2, (B, C, H, W), jnp.float32, minval=0.1, maxval=10.0)

    loss = scaleinvariant_rmse(pred, target)
    jax.block_until_ready(loss)

    # Pure-JAX reference (two-pass form, exactly as the PyTorch module).
    def ref(pred, target):
        p = jnp.squeeze(pred).reshape(B, -1)
        t = jnp.squeeze(target).reshape(B, -1)
        delta = jnp.log(t + 1e-8) - jnp.log(p + 1e-8)
        alpha = jnp.mean(delta, axis=1, keepdims=True)
        per = jnp.sqrt(jnp.mean((-delta + alpha) ** 2, axis=1))
        return jnp.mean(per)

    ref_loss = ref(pred, target)
    assert jnp.allclose(loss, ref_loss, rtol=1e-4, atol=1e-5), (loss, ref_loss)
    print("KERNEL_OK")
</pallas_src>

<mosaic_0001>
module attributes {stable_mosaic.version = 11 : i64} {
  func.func @_si_rmse_kernel(%arg0: i32, %arg1: i32, %arg2: memref<1x8x256xf32, #tpu.memory_space<vmem>>, %arg3: memref<1x8x256xf32, #tpu.memory_space<vmem>>, %arg4: memref<1x1x1xf32, #tpu.memory_space<vmem>>, %arg5: memref<8x256xf32, #tpu.memory_space<vmem>>, %arg6: memref<8x256xf32, #tpu.memory_space<vmem>>) attributes {dimension_semantics = [#tpu.dimension_semantics<parallel>, #tpu.dimension_semantics<arbitrary>], iteration_bounds = array<i64: 2, 1>, scalar_prefetch = 0 : i64, scratch_operands = 2 : i64, tpu.core_type = #tpu.core_type<tc>, window_params = [{transform_indices = @transform_0, window_bounds = array<i64: 1, 8, 256>}, {transform_indices = @transform_1, window_bounds = array<i64: 1, 8, 256>}, {transform_indices = @transform_2, window_bounds = array<i64: 1, 1, 1>}]} {
    %c0_i32 = arith.constant 0 : i32
    %0 = arith.cmpi eq, %arg1, %c0_i32 : i32
    %1 = arith.extui %0 : i1 to i32
    %c0_i32_0 = arith.constant 0 : i32
    %2 = arith.cmpi ne, %1, %c0_i32_0 : i32
    scf.if %2 {
      %cst_17 = arith.constant 0.000000e+00 : f32
      %24 = vector.broadcast %cst_17 : f32 to vector<8x256xf32>
      %c0_18 = arith.constant 0 : index
      %c0_19 = arith.constant 0 : index
      %25 = vector.load %arg5[%c0_18, %c0_19] : memref<8x256xf32, #tpu.memory_space<vmem>>, vector<8x256xf32>
      tpu.vector_store %arg5[%c0_18, %c0_19], %24 {strides = array<i32>} : memref<8x256xf32, #tpu.memory_space<vmem>>, vector<8x256xf32>,
      %cst_20 = arith.constant 0.000000e+00 : f32
      %26 = vector.broadcast %cst_20 : f32 to vector<8x256xf32>
      %c0_21 = arith.constant 0 : index
      %c0_22 = arith.constant 0 : index
      %27 = vector.load %arg6[%c0_21, %c0_22] : memref<8x256xf32, #tpu.memory_space<vmem>>, vector<8x256xf32>
      tpu.vector_store %arg6[%c0_21, %c0_22], %26 {strides = array<i32>} : memref<8x256xf32, #tpu.memory_space<vmem>>, vector<8x256xf32>,
    } else {
    }
    %c0 = arith.constant 0 : index
    %c0_1 = arith.constant 0 : index
    %c0_2 = arith.constant 0 : index
    %3 = vector.load %arg2[%c0, %c0_1, %c0_2] : memref<1x8x256xf32, #tpu.memory_space<vmem>>, vector<1x8x256xf32>
    %4 = vector.shape_cast %3 : vector<1x8x256xf32> to vector<8x256xf32>
    %c0_3 = arith.constant 0 : index
    %c0_4 = arith.constant 0 : index
    %c0_5 = arith.constant 0 : index
    %5 = vector.load %arg3[%c0_3, %c0_4, %c0_5] : memref<1x8x256xf32, #tpu.memory_space<vmem>>, vector<1x8x256xf32>
    %6 = vector.shape_cast %5 : vector<1x8x256xf32> to vector<8x256xf32>
    %cst = arith.constant 9.99999993E-9 : f32
    %7 = vector.broadcast %cst : f32 to vector<8x256xf32>
    %8 = arith.addf %6, %7 : vector<8x256xf32>
    %9 = math.log %8 : vector<8x256xf32>
    %cst_6 = arith.constant 9.99999993E-9 : f32
    %10 = vector.broadcast %cst_6 : f32 to vector<8x256xf32>
    %11 = arith.addf %4, %10 : vector<8x256xf32>
    %12 = math.log %11 : vector<8x256xf32>
    %13 = arith.subf %9, %12 : vector<8x256xf32>
    %c0_7 = arith.constant 0 : index
    %c0_8 = arith.constant 0 : index
    %14 = vector.load %arg5[%c0_7, %c0_8] : memref<8x256xf32, #tpu.memory_space<vmem>>, vector<8x256xf32>
    %15 = arith.addf %14, %13 : vector<8x256xf32>
    %c0_9 = arith.constant 0 : index
    %c0_10 = arith.constant 0 : index
    %16 = vector.load %arg5[%c0_9, %c0_10] : memref<8x256xf32, #tpu.memory_space<vmem>>, vector<8x256xf32>
    tpu.vector_store %arg5[%c0_9, %c0_10], %15 {strides = array<i32>} : memref<8x256xf32, #tpu.memory_space<vmem>>, vector<8x256xf32>,
    %c0_11 = arith.constant 0 : index
    %c0_12 = arith.constant 0 : index
    %17 = vector.load %arg6[%c0_11, %c0_12] : memref<8x256xf32, #tpu.memory_space<vmem>>, vector<8x256xf32>
    %18 = arith.mulf %13, %13 : vector<8x256xf32>
    %19 = arith.addf %17, %18 : vector<8x256xf32>
    %c0_13 = arith.constant 0 : index
    %c0_14 = arith.constant 0 : index
    %20 = vector.load %arg6[%c0_13, %c0_14] : memref<8x256xf32, #tpu.memory_space<vmem>>, vector<8x256xf32>
    tpu.vector_store %arg6[%c0_13, %c0_14], %19 {strides = array<i32>} : memref<8x256xf32, #tpu.memory_space<vmem>>, vector<8x256xf32>,
    %c0_i32_15 = arith.constant 0 : i32
    %21 = arith.cmpi eq, %arg1, %c0_i32_15 : i32
    %22 = arith.extui %21 : i1 to i32
    %c0_i32_16 = arith.constant 0 : i32
    %23 = arith.cmpi ne, %22, %c0_i32_16 : i32
    scf.if %23 {
      %c0_17 = arith.constant 0 : index
      %c0_18 = arith.constant 0 : index
      %24 = vector.load %arg5[%c0_17, %c0_18] : memref<8x256xf32, #tpu.memory_space<vmem>>, vector<8x256xf32>
      %cst_19 = arith.constant dense<0.000000e+00> : vector<8xf32>
      %25 = vector.multi_reduction <add>, %24, %cst_19 [1] : vector<8x256xf32> to vector<8xf32>
      %26 = vector.shape_cast %25 : vector<8xf32> to vector<8x1xf32>
      %cst_20 = arith.constant dense<0.000000e+00> : vector<1xf32>
      %27 = vector.multi_reduction <add>, %26, %cst_20 [0] : vector<8x1xf32> to vector<1xf32>
      %28 = vector.shape_cast %27 : vector<1xf32> to vector<1x1xf32>
      %c0_21 = arith.constant 0 : index
      %c0_22 = arith.constant 0 : index
      %29 = vector.load %arg6[%c0_21, %c0_22] : memref<8x256xf32, #tpu.memory_space<vmem>>, vector<8x256xf32>
      %cst_23 = arith.constant dense<0.000000e+00> : vector<8xf32>
      %30 = vector.multi_reduction <add>, %29, %cst_23 [1] : vector<8x256xf32> to vector<8xf32>
      %31 = vector.shape_cast %30 : vector<8xf32> to vector<8x1xf32>
      %cst_24 = arith.constant dense<0.000000e+00> : vector<1xf32>
      %32 = vector.multi_reduction <add>, %31, %cst_24 [0] : vector<8x1xf32> to vector<1xf32>
      %33 = vector.shape_cast %32 : vector<1xf32> to vector<1x1xf32>
      %cst_25 = arith.constant 3.906250e-03 : f32
      %34 = vector.broadcast %cst_25 : f32 to vector<1x1xf32>
      %35 = arith.mulf %28, %34 : vector<1x1xf32>
      %cst_26 = arith.constant 3.906250e-03 : f32
      %36 = vector.broadcast %cst_26 : f32 to vector<1x1xf32>
      %37 = arith.mulf %33, %36 : vector<1x1xf32>
      %38 = arith.mulf %35, %35 : vector<1x1xf32>
      %39 = arith.subf %37, %38 : vector<1x1xf32>
      %cst_27 = arith.constant 0.000000e+00 : f32
      %40 = vector.broadcast %cst_27 : f32 to vector<1x1xf32>
      %41 = arith.maximumf %39, %40 : vector<1x1xf32>
      %42 = math.sqrt %41 : vector<1x1xf32>
      %c0_28 = arith.constant 0 : index
      %c0_29 = arith.constant 0 : index
      %c0_30 = arith.constant 0 : index
      %43 = vector.load %arg4[%c0_28, %c0_29, %c0_30] : memref<1x1x1xf32, #tpu.memory_space<vmem>>, vector<1x1x1xf32>
      %44 = vector.shape_cast %43 : vector<1x1x1xf32> to vector<1x1xf32>
      %45 = vector.shape_cast %42 : vector<1x1xf32> to vector<1x1x1xf32>
      tpu.vector_store %arg4[%c0_28, %c0_29, %c0_30], %45 {strides = array<i32>} : memref<1x1x1xf32, #tpu.memory_space<vmem>>, vector<1x1x1xf32>,
    } else {
    }
    return
  }
  func.func @transform_0(%arg0: i32, %arg1: i32) -> (i32, i32, i32) {
    %c0_i32 = arith.constant 0 : i32
    %c0_i32_0 = arith.constant 0 : i32
    return %arg0, %arg1, %c0_i32 : i32, i32, i32
  }
  func.func @transform_1(%arg0: i32, %arg1: i32) -> (i32, i32, i32) {
    %c0_i32 = arith.constant 0 : i32
    %c0_i32_0 = arith.constant 0 : i32
    return %arg0, %arg1, %c0_i32 : i32, i32, i32
  }
  func.func @transform_2(%arg0: i32, %arg1: i32) -> (i32, i32, i32) {
    %c0_i32 = arith.constant 0 : i32
    %c0_i32_0 = arith.constant 0 : i32
    %c0_i32_1 = arith.constant 0 : i32
    return %arg0, %c0_i32, %c0_i32_0 : i32, i32, i32
  }
}

</mosaic_0001>

<llo_original>
// kernel: tpu_custom_call.1
$region0: #{tpu_custom_call.1}
  #allocation0 [shape = 'u32[]', space=smem, size = 0x4, offset = 0x4, fixed_abs, tag = 'smem constant byte address 0x4 - core index']
  #allocation1 [shape = 'u32[144,128]{1,0:T(1,128)}', space=vmem, size = 0x12000, scoped, tag = 'internal scratch']
  #allocation2 [shape = 'f32[8,256]{1,0:T(8,128)}', space=vmem, size = 0x2000, scoped, tag = 'scratch operand']
  #allocation3 [shape = 'f32[8,256]{1,0:T(8,128)}', space=vmem, size = 0x2000, scoped, tag = 'scratch operand']
  %s0 = inlined_call_operand.hbm [shape: f32[2,8,256], index: 0, kind: input, shape index: {}]
  %s1 = inlined_call_operand.hbm [shape: f32[2,8,256], index: 1, kind: input, shape index: {}]
  %s2 = inlined_call_operand.vmem [shape: f32[2,1,1], index: 2, kind: output, shape index: {}]
  %s3 = sld [smem:[#allocation0]]
  $region57: #{tpu_custom_call.1} parent=0
    _
  %s5 = ssub.s32 1, %s3
  %s6 = scalar_select 0, %s5, %s3
  $region1: #{tpu_custom_call.1} parent=0
    #allocation4 [shape = 'u8[16384]{0}', space=vmem, size = 0x4000, scoped, tag = 'input window, operand 0']
    #allocation5 [shape = 's32[2]{0}', space=sflag, size = 0x8, scoped, tag = 'scoped memory for tpu_custom_call.1']
    #allocation6 [shape = 'u8[16384]{0}', space=vmem, size = 0x4000, scoped, tag = 'input window, operand 1']
    #allocation7 [shape = 's32[2]{0}', space=sflag, size = 0x8, scoped, tag = 'scoped memory for tpu_custom_call.1']
    %7 = vsyncpa [#allocation5], 0
    %s8 = scalar_lea.sflag [#allocation5], 1
    %9 = vsyncpa %s8, 0
    %10 = vsyncpa [#allocation7], 0
    %s11 = scalar_lea.sflag [#allocation7], 1
    %12 = vsyncpa %s11, 0
    loop: start=0, step=1, limit=4
    $region2: #{tpu_custom_call.1} parent=1 // loop_pre_header
      _
    $region3: #{tpu_custom_call.1} parent=1 // loop_header
      %s14 = sphi 0, %s18
      %p15 = scmp.ge.s32.totalorder %s14, 4
      %s21 = sphi 0, %s33
      %s22 = sphi 0, %s29
      %s23 = sphi 0, %s21
      %s24 = sphi 0, %s22
      %s25 = sphi 0, %s23
      %s26 = sphi 0, %s24
      %s38 = sphi 0, %s40
      %s41 = sphi 0, %s38
      %s42 = sphi 0, %s41
      %s58 = sphi 0, %s42
      %s66 = sphi 0, %s68
      %s69 = sphi 0, %s66
      %s70 = sphi 0, %s69
      %s86 = sphi 0, %s70
      %s92 = sphi 0, %s94
      %s95 = sphi 0, %s92
      %s96 = sphi 0, %s95
      %s112 = sphi 0, %s96
    $region4: #{tpu_custom_call.1} parent=1 // loop_header_branch
      %17 = sbr.rel (%p15) target = $region8
    $region5: #{tpu_custom_call.1} parent=1 // loop_body
      %s19 = ssub.s32 %s14, 1
      %s20 = ssub.s32 %s14, 2
      %s27 = sadd.s32 1, %s22
      %p28 = scmp.ge.s32.totalorder %s27, 1
      %s29 = scalar_select %p28, 0, %s27
      %s30 = sadd.s32 1, %s21
      %s31 = scalar_select %p28, %s30, %s21
      %p32 = scmp.ge.s32.totalorder %s31, 2
      %s33 = scalar_select %p32, 0, %s31
      %s34 = ssub.s32 %s21, %s33
      %s35 = ssub.s32 %s22, %s29
      %s36 = sor.u32 %s34, %s35
      %p37 = scmp.eq.s32.totalorder %s36, 0
      %s39 = sadd.s32 %s38, 1
      %s40 = scalar_select %p37, %s38, %s39
      %p43 = pneg %p37
      %p44 = scmp.eq.s32.totalorder %s14, 1
      %p45 = por %p43, %p44
      %p46 = scmp.ne.s32.totalorder %s38, %s41
      %p47 = scmp.eq.s32.totalorder %s14, 0
      %p48 = por %p46, %p47
      %p49 = scmp.ne.s32.totalorder %s38, %s41
      %p50 = scmp.eq.s32.totalorder %s19, 1
      %p51 = por %p49, %p50
      %p52 = scmp.ne.s32.totalorder %s41, %s42
      %p53 = scmp.eq.s32.totalorder %s19, 0
      %p54 = por %p52, %p53
      %p55 = scmp.ne.s32.totalorder %s41, %s42
      %p56 = scmp.eq.s32.totalorder %s20, 1
      %p57 = por %p55, %p56
      %p59 = scmp.ne.s32.totalorder %s42, %s58
      %p60 = scmp.eq.s32.totalorder %s20, 0
      %p61 = por %p59, %p60
      %s62 = ssub.s32 %s21, %s33
      %s63 = ssub.s32 %s22, %s29
      %s64 = sor.u32 %s62, %s63
      %p65 = scmp.eq.s32.totalorder %s64, 0
      %s67 = sadd.s32 %s66, 1
      %s68 = scalar_select %p65, %s66, %s67
      %p71 = pneg %p65
      %p72 = scmp.eq.s32.totalorder %s14, 1
      %p73 = por %p71, %p72
      %p74 = scmp.ne.s32.totalorder %s66, %s69
      %p75 = scmp.eq.s32.totalorder %s14, 0
      %p76 = por %p74, %p75
      %p77 = scmp.ne.s32.totalorder %s66, %s69
      %p78 = scmp.eq.s32.totalorder %s19, 1
      %p79 = por %p77, %p78
      %p80 = scmp.ne.s32.totalorder %s69, %s70
      %p81 = scmp.eq.s32.totalorder %s19, 0
      %p82 = por %p80, %p81
      %p83 = scmp.ne.s32.totalorder %s69, %s70
      %p84 = scmp.eq.s32.totalorder %s20, 1
      %p85 = por %p83, %p84
      %p87 = scmp.ne.s32.totalorder %s70, %s86
      %p88 = scmp.eq.s32.totalorder %s20, 0
      %p89 = por %p87, %p88
      %s90 = ssub.s32 %s21, %s33
      %p91 = scmp.eq.s32.totalorder %s90, 0
      %s93 = sadd.s32 %s92, 1
      %s94 = scalar_select %p91, %s92, %s93
      %p97 = pneg %p91
      %p98 = scmp.eq.s32.totalorder %s14, 1
      %p99 = por %p97, %p98
      %p100 = scmp.ne.s32.totalorder %s92, %s95
      %p101 = scmp.eq.s32.totalorder %s14, 0
      %p102 = por %p100, %p101
      %p103 = scmp.ne.s32.totalorder %s92, %s95
      %p104 = scmp.eq.s32.totalorder %s19, 1
      %p105 = por %p103, %p104
      %p106 = scmp.ne.s32.totalorder %s95, %s96
      %p107 = scmp.eq.s32.totalorder %s19, 0
      %p108 = por %p106, %p107
      %p109 = scmp.ne.s32.totalorder %s95, %s96
      %p110 = scmp.eq.s32.totalorder %s20, 1
      %p111 = por %p109, %p110
      %p113 = scmp.ne.s32.totalorder %s96, %s112
      %p114 = scmp.eq.s32.totalorder %s20, 0
      %p115 = por %p113, %p114
      %p116 = scmp.le.s32.totalorder 1, %s14
      %p117 = scmp.lt.s32.totalorder %s14, 3
      %p118 = pnand %p116, %p117
      %p119 = pneg %p118
      // Predicated region
      $region9: #{tpu_custom_call.1} parent=5 // pred_check
        _
      $region10: #{tpu_custom_call.1} parent=5 // pred_check_branch
        %121 = sbr.rel (%p118) target = $region12
      $region11: #{tpu_custom_call.1} parent=5 // pred_region
        %s122 = ssub.s32 %s14, 1
      $region12: #{tpu_custom_call.1} parent=5 // pred_fallthru
        _
      %p123 = scmp.lt.s32.totalorder %s14, 2
      // Predicated region
      $region13: #{tpu_custom_call.1} parent=5 // pred_check
        %p124 = pneg %p123
      $region14: #{tpu_custom_call.1} parent=5 // pred_check_branch
        %126 = sbr.rel (%p124) target = $region16
      $region15: #{tpu_custom_call.1} parent=5 // pred_region
        // Predicated region
        $region17: #{tpu_custom_call.1} parent=15 // pred_check
          %p127 = pneg %p48
        $region18: #{tpu_custom_call.1} parent=15 // pred_check_branch
          %129 = sbr.rel (%p127) target = $region20
        $region19: #{tpu_custom_call.1} parent=15 // pred_region
          %s130 = sand.u32 %s38, 1
          %s131 = scalar_lea.sflag [#allocation5], %s130
          %s132 = sand.u32 %s38, 1
          %s133 = smul.addr %s132, 16
          %s134 = scalar_lea.vmem [#allocation4], %s133
          %s136 = ssub.s32 256, 256
          %137 = vsyncadd %s131, %s136
          %s138 = smul.addr %s22, 2
          %s139 = smul.addr %s21, 2
          %s140 = sadd.s32 %s138, %s139
          %s141 = smul.addr %s140, 128
          %s142 = scalar_lea.hbm %s0, %s141
          %s144 = sshll.u32 %s134, 4
          %s145 = int_to_ptr.vmem [resolvable:$true] %s144
          %147 = dma.hbm_to_vmem [thread:$0]  %s142, 256, %s145, %s131
        $region20: #{tpu_custom_call.1} parent=15 // pred_fallthru
          _
        // Predicated region
        $region21: #{tpu_custom_call.1} parent=15 // pred_check
          %p148 = pneg %p76
        $region22: #{tpu_custom_call.1} parent=15 // pred_check_branch
          %150 = sbr.rel (%p148) target = $region24
        $region23: #{tpu_custom_call.1} parent=15 // pred_region
          %s151 = sand.u32 %s66, 1
          %s152 = scalar_lea.sflag [#allocation7], %s151
          %s153 = sand.u32 %s66, 1
          %s154 = smul.addr %s153, 16
          %s155 = scalar_lea.vmem [#allocation6], %s154
          %s157 = ssub.s32 256, 256
          %158 = vsyncadd %s152, %s157
          %s159 = smul.addr %s22, 2
          %s160 = smul.addr %s21, 2
          %s161 = sadd.s32 %s159, %s160
          %s162 = smul.addr %s161, 128
          %s163 = scalar_lea.hbm %s1, %s162
          %s165 = sshll.u32 %s155, 4
          %s166 = int_to_ptr.vmem [resolvable:$true] %s165
          %168 = dma.hbm_to_vmem [thread:$0]  %s163, 256, %s166, %s152
        $region24: #{tpu_custom_call.1} parent=15 // pred_fallthru
          _
      $region16: #{tpu_custom_call.1} parent=5 // pred_fallthru
        _
      %p169 = scmp.le.s32.totalorder 1, %s14
      %p170 = scmp.lt.s32.totalorder %s14, 3
      %p171 = pnand %p169, %p170
      %p172 = pneg %p171
      // Predicated region
      $region25: #{tpu_custom_call.1} parent=5 // pred_check
        _
      $region26: #{tpu_custom_call.1} parent=5 // pred_check_branch
        %174 = sbr.rel (%p171) target = $region28
      $region27: #{tpu_custom_call.1} parent=5 // pred_region
        %s175 = ssub.s32 %s14, 1
        %s176 = sand.u32 %s41, 1
        %s177 = scalar_lea.sflag [#allocation5], %s176
        %s178 = sand.u32 %s41, 1
        %s179 = smul.addr %s178, 16
        %s180 = scalar_lea.vmem [#allocation4], %s179
        // Predicated region
        $region29: #{tpu_custom_call.1} parent=27 // pred_check
          %p181 = pneg %p54
        $region30: #{tpu_custom_call.1} parent=27 // pred_check_branch
          %183 = sbr.rel (%p181) target = $region32
        $region31: #{tpu_custom_call.1} parent=27 // pred_region
          %184 = dma.done %s177, 256
        $region32: #{tpu_custom_call.1} parent=27 // pred_fallthru
          _
        %s185 = sand.u32 %s69, 1
        %s186 = scalar_lea.sflag [#allocation7], %s185
        %s187 = sand.u32 %s69, 1
        %s188 = smul.addr %s187, 16
        %s189 = scalar_lea.vmem [#allocation6], %s188
        // Predicated region
        $region33: #{tpu_custom_call.1} parent=27 // pred_check
          %p190 = pneg %p82
        $region34: #{tpu_custom_call.1} parent=27 // pred_check_branch
          %192 = sbr.rel (%p190) target = $region36
        $region35: #{tpu_custom_call.1} parent=27 // pred_region
          %193 = dma.done %s186, 256
        $region36: #{tpu_custom_call.1} parent=27 // pred_fallthru
          _
        %s194 = sand.u32 %s41, 1
        %s195 = scalar_lea.sflag [#allocation5], %s194
        %s196 = sand.u32 %s41, 1
        %s197 = smul.addr %s196, 16
        %s198 = scalar_lea.vmem [#allocation4], %s197
        %p199 = pneg %p54
        %p200 = pneg %p51
        %s201 = sand.u32 %s69, 1
        %s202 = scalar_lea.sflag [#allocation7], %s201
        %s203 = sand.u32 %s69, 1
        %s204 = smul.addr %s203, 16
        %s205 = scalar_lea.vmem [#allocation6], %s204
        %p206 = pneg %p82
        %p207 = pneg %p79
        %p208 = pneg %p108
        %p209 = pneg %p105
        %p210 = scmp.lt.s32.totalorder %s23, 1
        %s211 = scalar_select %p210, %s23, 1
        %s212 = scalar_lea.vmem %s2, %s211
        %p213 = scmp.lt.s32.totalorder %s23, 1
        %s214 = scalar_select %p213, %s23, 1
        %s215 = scalar_lea.vmem %s2, %s214
        %p216 = scmp.eq.s32.totalorder %s24, 0
        // Predicated region
        $region37: #{tpu_custom_call.1} parent=27 // pred_check
          %p217 = pneg %p216
        $region38: #{tpu_custom_call.1} parent=27 // pred_check_branch
          %219 = sbr.rel (%p217) target = $region40
        $region39: #{tpu_custom_call.1} parent=27 // pred_region
          %220 = vst [vmem:[#allocation2] sm:$0xff] 0.0
          %221 = vst [vmem:[#allocation2 + $0x8] sm:$0xff] 0.0
          %222 = vst [vmem:[#allocation3] sm:$0xff] 0.0
          %223 = vst [vmem:[#allocation3 + $0x8] sm:$0xff] 0.0
        $region40: #{tpu_custom_call.1} parent=27 // pred_fallthru
          _
        %v224 = vld [vmem:[%s180] sm:$0xff]
        %v225 = vld [vmem:[%s180 + $0x8] sm:$0xff]
        %v226 = vld [vmem:[%s189] sm:$0xff]
        %v227 = vld [vmem:[%s189 + $0x8] sm:$0xff]
        %v228 = vadd.f32 %v226, 1e-08
        %v229 = vadd.f32 %v227, 1e-08
        %v230 = vlog2.pop %v228
        %v231 = vmul.f32 %v230, 0.6931472
        %v232 = vlog2.pop %v229
        %v233 = vmul.f32 %v232, 0.6931472
        %v234 = vadd.f32 %v224, 1e-08
        %v235 = vadd.f32 %v225, 1e-08
        %v236 = vlog2.pop %v234
        %v237 = vmul.f32 %v236, 0.6931472
        %v238 = vlog2.pop %v235
        %v239 = vmul.f32 %v238, 0.6931472
        %v240 = vsub.f32 %v231, %v237
        %v241 = vsub.f32 %v233, %v239
        %v242 = vld [vmem:[#allocation2] sm:$0xff]
        %v243 = vld [vmem:[#allocation2 + $0x8] sm:$0xff]
        %v244 = vadd.f32 %v242, %v240
        %v245 = vadd.f32 %v243, %v241
        %246 = vst [vmem:[#allocation2] sm:$0xff] %v244
        %247 = vst [vmem:[#allocation2 + $0x8] sm:$0xff] %v245
        %v248 = vld [vmem:[#allocation3] sm:$0xff]
        %v249 = vld [vmem:[#allocation3 + $0x8] sm:$0xff]
        %v250 = vmul.f32 %v240, %v240
        %v251 = vmul.f32 %v241, %v241
        %v252 = vadd.f32 %v248, %v250
        %v253 = vadd.f32 %v249, %v251
        %254 = vst [vmem:[#allocation3] sm:$0xff] %v252
        %255 = vst [vmem:[#allocation3 + $0x8] sm:$0xff] %v253
        // Predicated region
        $region41: #{tpu_custom_call.1} parent=27 // pred_check
          %p256 = pneg %p216
        $region42: #{tpu_custom_call.1} parent=27 // pred_check_branch
          %258 = sbr.rel (%p256) target = $region44
        $region43: #{tpu_custom_call.1} parent=27 // pred_region
          %v259 = vld [vmem:[#allocation2] sm:$0xff]
          %v260 = vld [vmem:[#allocation2 + $0x8] sm:$0xff]
          %v261 = vadd.f32 %v259, %v260
          %262 = vadd.xlane.f32.xlu0 %v261
          %v263 = vpop.xlane.xlu0 %262
          %v264 = vrot.slane %v263, 4
          %v265 = vadd.f32 %v263, %v264
          %v266 = vrot.slane %v265, 2
          %v267 = vadd.f32 %v265, %v266
          %v268 = vrot.slane %v267, 1
          %v269 = vadd.f32 %v267, %v268
          %v270 = vld [vmem:[#allocation3] sm:$0xff]
          %v271 = vld [vmem:[#allocation3 + $0x8] sm:$0xff]
          %v272 = vadd.f32 %v270, %v271
          %273 = vadd.xlane.f32.xlu0 %v272
          %v274 = vpop.xlane.xlu0 %273
          %v275 = vrot.slane %v274, 4
          %v276 = vadd.f32 %v274, %v275
          %v277 = vrot.slane %v276, 2
          %v278 = vadd.f32 %v276, %v277
          %v279 = vrot.slane %v278, 1
          %v280 = vadd.f32 %v278, %v279
          %v281 = vmul.f32 %v269, 0.00390625
          %v282 = vmul.f32 %v280, 0.00390625
          %v283 = vmul.f32 %v281, %v281
          %v284 = vsub.f32 %v282, %v283
          %v285 = vmax.f32 %v284, 0.0
          %v286 = vrsqrt.pop %v285
          %v287 = vmul.f32 %v285, %v286
          %vm288 = vcmp.eq.f32.partialorder %v285, inf
          %v289 = vsel %vm288, %v285, %v287
          %vm290 = vcmp.eq.f32.partialorder %v285, 0.0
          %v291 = vand.u32 %v285, 2147483648
          %v292 = vsel %vm290, %v291, %v289
          %vm293 = vcmask 0
          %294 = vst.msk [vmem:[%s215] sm:$0x1] %vm293, %v292
        $region44: #{tpu_custom_call.1} parent=27 // pred_fallthru
          _
        %p295 = scmp.lt.s32.totalorder %s23, 1
        %s296 = scalar_select %p295, %s23, 1
        %s297 = scalar_lea.vmem %s2, %s296
        // Predicated region
        $region45: #{tpu_custom_call.1} parent=27 // pred_check
          %p298 = pneg %p105
        $region46: #{tpu_custom_call.1} parent=27 // pred_check_branch
          %300 = sbr.rel (%p298) target = $region48
        $region47: #{tpu_custom_call.1} parent=27 // pred_region
          _
        $region48: #{tpu_custom_call.1} parent=27 // pred_fallthru
          _
      $region28: #{tpu_custom_call.1} parent=5 // pred_fallthru
        _
      %p301 = scmp.le.s32.totalorder 2, %s14
      // Predicated region
      $region49: #{tpu_custom_call.1} parent=5 // pred_check
        %p302 = pneg %p301
      $region50: #{tpu_custom_call.1} parent=5 // pred_check_branch
        %304 = sbr.rel (%p302) target = $region52
      $region51: #{tpu_custom_call.1} parent=5 // pred_region
        %s305 = ssub.s32 %s14, 2
        // Predicated region
        $region53: #{tpu_custom_call.1} parent=51 // pred_check
          %p306 = pneg %p111
        $region54: #{tpu_custom_call.1} parent=51 // pred_check_branch
          %308 = sbr.rel (%p306) target = $region56
        $region55: #{tpu_custom_call.1} parent=51 // pred_region
          %p309 = scmp.lt.s32.totalorder %s25, 1
          %s310 = scalar_select %p309, %s25, 1
          %s311 = scalar_lea.vmem %s2, %s310
        $region56: #{tpu_custom_call.1} parent=51 // pred_fallthru
          _
      $region52: #{tpu_custom_call.1} parent=5 // pred_fallthru
        _
    $region6: #{tpu_custom_call.1} parent=1 // loop_footer
      %s18 = sadd.s32 1, %s14
    $region7: #{tpu_custom_call.1} parent=1 // loop_footer_branch
      %13 = sbr.rel target = $region3
    $region8: #{tpu_custom_call.1} parent=1 // loop_exit
      _
    %312 = vsyncpa [#allocation5], 1
    %s313 = scalar_lea.sflag [#allocation5], 1
    %314 = vsyncpa %s313, 1
    %315 = vsyncpa [#allocation7], 1
    %s316 = scalar_lea.sflag [#allocation7], 1
    %317 = vsyncpa %s316, 1

</llo_original>
